<compile_context>
chip_gen: v6e
topology: v6e:2x2x1
jax: 0.10.0
libtpu: 0.0.40
codegen_flags: <defaults>
</compile_context>

<pallas_src>
import functools

import numpy as np
import jax
import jax.numpy as jnp
from jax import lax
from jax.experimental import pallas as pl
from jax.experimental.pallas import tpu as pltpu


# ----------------------------------------------------------------------------- #
# Hardware / tiling helpers
# ----------------------------------------------------------------------------- #

def _vmem_capacity_bytes():
    """Best-effort per-core VMEM capacity; conservative fallback (v7x = 64 MiB)."""
    try:
        info = pltpu.get_tpu_info()
        cap = getattr(info, "vmem_capacity_bytes", None)
        if cap:
            return int(cap)
    except Exception:
        pass
    return 64 * 1024 * 1024


def _pick_tile(L, H, out_itemsize, compute_itemsize):
    """Largest tile T <= 128 that divides L and fits the (corrected) VMEM model.

    The budget now includes the double-buffered output tile, the double-buffered
    U/V input tiles, the live slab intermediate and a headroom term for Mosaic
    internal scratch.  T is capped at 128: per-step overhead (~0.35 us) is already
    negligible at T=64 while wasted diagonal-block work grows ~T/L.
    """
    budget = int(0.55 * _vmem_capacity_bytes())

    def need(t):
        slab = 8 if t % 8 == 0 else t
        return (2 * t * t * H * out_itemsize          # double-buffered output tile
                + 2 * 2 * t * H * compute_itemsize    # double-buffered U/V tiles
                + 2 * slab * t * H * 4                # live slab (s, tanh(s)), f32 bound
                + 2 * 1024 * 1024)                    # Mosaic internal scratch headroom

    for t in (128, 64, 32, 16, 8):
        if t <= L and L % t == 0 and need(t) <= budget:
            return t
    # Tiny / awkward L: single full-extent block — but only if it actually fits.
    if need(L) > budget:
        raise ValueError(
            f"seq_len={L}, hidden={H}: no tile size divides L and fits VMEM "
            f"(budget {budget} B). Pad L to a multiple of 8/16/32/64/128.")
    return L


@functools.lru_cache(maxsize=None)
def _block_pair_tables(nb):
    """Upper-triangle block-pair enumeration (jb >= ib), vectorized numpy."""
    counts = np.arange(nb, 0, -1)
    P = int(counts.sum())
    ib = np.repeat(np.arange(nb), counts)
    row_start = np.concatenate(([0], np.cumsum(counts)[:-1]))
    jb = np.arange(P) - np.repeat(row_start, counts) + ib
    return ib.astype(np.int32), jb.astype(np.int32), P


@functools.lru_cache(maxsize=None)
def _pair_gather_indices(L, T):
    """(p, ti, tj) indices mapping TPLinker pair order into the packed blocks."""
    nb = L // T
    counts = np.arange(L, 0, -1)                     # L - i
    total = L * (L + 1) // 2
    ii = np.repeat(np.arange(L), counts)
    row_start = np.concatenate(([0], np.cumsum(counts)[:-1]))
    jj = np.arange(total) - np.repeat(row_start, counts) + ii
    ib = ii // T
    jb = jj // T
    blk_counts = np.arange(nb, 0, -1)
    blk_row_start = np.concatenate(([0], np.cumsum(blk_counts)[:-1]))
    p_idx = blk_row_start[ib] + (jb - ib)
    return (p_idx.astype(np.int32),
            (ii % T).astype(np.int32),
            (jj % T).astype(np.int32))


# ----------------------------------------------------------------------------- #
# Kernel
# ----------------------------------------------------------------------------- #

def _handshaking_cat_kernel(b_tab, ib_tab, jb_tab, u_ref, v_ref, out_ref):
    # b_tab / ib_tab / jb_tab: SMEM scalar-prefetch tables (used by index_maps only).
    # u_ref : (1, T, H)  row tile of U = X @ W1 + b   (the "repeat" hidden, index i)
    # v_ref : (1, T, H)  col tile of V = X @ W2       (the "visible" hidden, index j)
    # out_ref: (1, T, T, H)   out[0, ti, tj, :] = tanh(U[i] + V[j])
    del b_tab, ib_tab, jb_tab
    T = u_ref.shape[1]
    slab = 8 if T % 8 == 0 else T        # sublane-sized row slabs
    n_slabs = T // slab

    v = v_ref[0][None, :, :]             # (1, T, H), loaded once, reused per slab
    u_view = u_ref.at[0]                 # (T, H) ref view (no load)
    o_view = out_ref.at[0]               # (T, T, H) ref view

    def body(r, carry):
        r0 = pl.multiple_of(r * slab, slab)
        u_slab = u_view[pl.ds(r0, slab), :]            # (slab, H)
        s = u_slab[:, None, :] + v                     # (slab, T, H), compute dtype
        o_view[pl.ds(r0, slab), :, :] = jnp.tanh(s).astype(out_ref.dtype)
        return carry

    lax.fori_loop(0, n_slabs, body, 0, unroll=True)


# ----------------------------------------------------------------------------- #
# Wrapper
# ----------------------------------------------------------------------------- #

def handshaking_kernel_cat(seq_hiddens, w_combine, b_combine, *, tile=None,
                           out_dtype=None, compute_dtype=None):
    """HandshakingKernel forward, shaking_type='cat'.

    seq_hiddens  : (B, L, H) f32
    w_combine    : (2H, H)   math layout (y = cat @ W + b)
    b_combine    : (H,)
    tile         : optional override of the (T, T) pair-square tile size
    out_dtype    : output dtype (default: input dtype; bf16 halves HBM writeback)
    compute_dtype: in-kernel add+tanh dtype (default f32; bf16 recommended on
                   v6e/v7x only — v5e has no bf16 VPU/EUP)
    returns      : (B, L*(L+1)//2, H)
    """
    B, L, H = seq_hiddens.shape
    out_dtype = jnp.dtype(out_dtype or seq_hiddens.dtype)
    compute_dtype = jnp.dtype(compute_dtype or jnp.float32)
    T = tile if tile is not None else _pick_tile(L, H, out_dtype.itemsize,
                                                 compute_dtype.itemsize)
    assert L % T == 0, (L, T)

    # Hoisted GEMMs: one well-MXU-shaped matmul per half of the weight, f32 accum,
    # bias folded in once per sequence position.
    w1 = w_combine[:H, :]
    w2 = w_combine[H:, :]
    U = (jnp.dot(seq_hiddens, w1, preferred_element_type=jnp.float32)
         + b_combine[None, None, :]).astype(compute_dtype)          # (B, L, H)
    V = jnp.dot(seq_hiddens, w2,
                preferred_element_type=jnp.float32).astype(compute_dtype)

    # Flattened grid over (batch x upper-triangle block pairs) so megacore (v7x)
    # splits evenly even at tiny B.
    nb = L // T
    ib_blk, jb_blk, P = _block_pair_tables(nb)
    b_tab = jnp.asarray(np.repeat(np.arange(B, dtype=np.int32), P))
    ib_tab = jnp.asarray(np.tile(ib_blk, B))
    jb_tab = jnp.asarray(np.tile(jb_blk, B))

    cap = _vmem_capacity_bytes()
    vmem_limit = max(32 * 1024 * 1024, int(0.8 * cap))   # ~51 MiB on v7x, ~102 MiB on v5e/v6e

    in_it = compute_dtype.itemsize
    out_it = out_dtype.itemsize
    n_elem = B * P * T * T * H
    cost = pl.CostEstimate(
        flops=n_elem,                        # broadcast-add
        transcendentals=n_elem,              # tanh
        bytes_accessed=B * P * (2 * T * H * in_it) + n_elem * out_it,
    )

    packed = pl.pallas_call(
        _handshaking_cat_kernel,
        out_shape=jax.ShapeDtypeStruct((B * P, T, T, H), out_dtype),
        grid_spec=pltpu.PrefetchScalarGridSpec(
            num_scalar_prefetch=3,
            grid=(B * P,),
            in_specs=[
                # row tile of U: sequence block ib_tab[g] of batch b_tab[g]
                pl.BlockSpec((1, T, H), lambda g, bt, it, jt: (bt[g], it[g], 0)),
                # col tile of V: sequence block jb_tab[g]
                pl.BlockSpec((1, T, H), lambda g, bt, it, jt: (bt[g], jt[g], 0)),
            ],
            out_specs=pl.BlockSpec((1, T, T, H),
                                   lambda g, bt, it, jt: (g, 0, 0, 0)),
        ),
        compiler_params=pltpu.CompilerParams(
            dimension_semantics=("parallel",),
            vmem_limit_bytes=vmem_limit,
        ),
        cost_estimate=cost,
    )(b_tab, ib_tab, jb_tab, U, V)

    # Epilogue: gather the TPLinker pair ordering from the packed triangle blocks.
    # Runs in out_dtype (bf16 when requested -> halved read+write traffic).
    p_idx, ii_idx, jj_idx = _pair_gather_indices(L, T)
    square_packed = packed.reshape(B, P, T, T, H)
    return square_packed[:, jnp.asarray(p_idx), jnp.asarray(ii_idx),
                         jnp.asarray(jj_idx), :]                    # (B, L*(L+1)//2, H)


# ----------------------------------------------------------------------------- #
# Reference + test
# ----------------------------------------------------------------------------- #

def _reference_cat(seq_hiddens, w_combine, b_combine):
    """Pure-JAX reference mirroring the PyTorch loop (shaking_type='cat')."""
    B, L, H = seq_hiddens.shape
    outs = []
    for i in range(L):
        rep = jnp.broadcast_to(seq_hiddens[:, i:i + 1, :], (B, L - i, H))
        vis = seq_hiddens[:, i:, :]
        cat = jnp.concatenate([rep, vis], axis=-1)           # (B, L-i, 2H)
        outs.append(jnp.tanh(cat @ w_combine + b_combine))   # (B, L-i, H)
    return jnp.concatenate(outs, axis=1)


if __name__ == "__main__":
    key = jax.random.PRNGKey(0)

    configs = [
        # f32 path (matches the PyTorch module numerically)
        dict(B=2, L=8,  H=32,  tile=None, out_dtype=None,         compute_dtype=None,         tol=2e-5),
        dict(B=2, L=16, H=32,  tile=8,    out_dtype=None,         compute_dtype=None,         tol=2e-5),
        # bf16 writeback + bf16 add/tanh path (v6e/v7x roofline option)
        dict(B=2, L=16, H=128, tile=8,    out_dtype=jnp.bfloat16, compute_dtype=jnp.bfloat16, tol=3e-2),
    ]
    for cfg in configs:
        B, L, H = cfg["B"], cfg["L"], cfg["H"]
        k_x, k_w, k_b = jax.random.split(jax.random.fold_in(key, L * 1000 + H), 3)
        seq_hiddens = jax.random.normal(k_x, (B, L, H), dtype=jnp.float32)
        # Deterministic synthetic init of nn.Linear(2H, H) (math layout: y = x@W + b)
        w_combine = jax.random.normal(k_w, (2 * H, H), dtype=jnp.float32) * 0.05
        b_combine = jax.random.normal(k_b, (H,), dtype=jnp.float32) * 0.05

        out = handshaking_kernel_cat(seq_hiddens, w_combine, b_combine,
                                     tile=cfg["tile"], out_dtype=cfg["out_dtype"],
                                     compute_dtype=cfg["compute_dtype"])
        out = jax.block_until_ready(out)

        ref = _reference_cat(seq_hiddens, w_combine, b_combine)
        assert out.shape == (B, L * (L + 1) // 2, H), out.shape
        assert jnp.allclose(out.astype(jnp.float32), ref,
                            atol=cfg["tol"], rtol=cfg["tol"]), "mismatch vs reference"

    # TODO(synk): only shaking_type='cat' is implemented; 'cat_plus'/'cln'/'cln_plus'
    # variants (inner LSTM / pooling context, conditional LayerNorm) are not part
    # of this kernel.
    print("KERNEL_OK")
</pallas_src>

<mosaic_0001>
module attributes {stable_mosaic.version = 11 : i64} {
  func.func @_handshaking_cat_kernel(%arg0: i32, %arg1: memref<2xi32, #tpu.memory_space<smem>>, %arg2: memref<2xi32, #tpu.memory_space<smem>>, %arg3: memref<2xi32, #tpu.memory_space<smem>>, %arg4: memref<1x8x32xf32, #tpu.memory_space<vmem>>, %arg5: memref<1x8x32xf32, #tpu.memory_space<vmem>>, %arg6: memref<1x8x8x32xf32, #tpu.memory_space<vmem>>) attributes {dimension_semantics = [#tpu.dimension_semantics<parallel>], iteration_bounds = array<i64: 2>, scalar_prefetch = 3 : i64, scratch_operands = 0 : i64, tpu.core_type = #tpu.core_type<tc>, window_params = [{transform_indices = @transform_0, window_bounds = array<i64: 1, 8, 32>}, {transform_indices = @transform_1, window_bounds = array<i64: 1, 8, 32>}, {transform_indices = @transform_2, window_bounds = array<i64: 1, 8, 8, 32>}]} {
    %c0 = arith.constant 0 : index
    %c0_0 = arith.constant 0 : index
    %c0_1 = arith.constant 0 : index
    %0 = vector.load %arg5[%c0, %c0_0, %c0_1] : memref<1x8x32xf32, #tpu.memory_space<vmem>>, vector<1x8x32xf32>
    %1 = vector.shape_cast %0 : vector<1x8x32xf32> to vector<8x32xf32>
    %2 = vector.shape_cast %1 : vector<8x32xf32> to vector<1x8x32xf32>
    %c0_i32 = arith.constant 0 : i32
    %c0_i32_2 = arith.constant 0 : i32
    %c0_i32_3 = arith.constant 0 : i32
    %c8_i32 = arith.constant 8 : i32
    %3 = arith.muli %c0_i32_3, %c8_i32 : i32
    %4 = tpu.assume_multiple %3, 8 : i32
    %c0_i32_4 = arith.constant 0 : i32
    %c0_i32_5 = arith.constant 0 : i32
    %5 = tpu.memref_slice %arg4[%c0_i32, %c0_i32_4, %c0_i32_5] : memref<1x8x32xf32, #tpu.memory_space<vmem>> -> memref<1x8x32xf32, #tpu.memory_space<vmem>>
    %6 = tpu.memref_squeeze %5 : memref<1x8x32xf32, #tpu.memory_space<vmem>> -> memref<8x32xf32, #tpu.memory_space<vmem>>
    %7 = arith.index_cast %4 : i32 to index
    %c0_6 = arith.constant 0 : index
    %8 = vector.load %6[%7, %c0_6] : memref<8x32xf32, #tpu.memory_space<vmem>>, vector<8x32xf32>
    %9 = vector.shape_cast %8 : vector<8x32xf32> to vector<8x1x32xf32>
    %10 = vector.broadcast %9 : vector<8x1x32xf32> to vector<8x8x32xf32>
    %11 = vector.broadcast %2 : vector<1x8x32xf32> to vector<8x8x32xf32>
    %12 = arith.addf %10, %11 : vector<8x8x32xf32>
    %13 = math.tanh %12 : vector<8x8x32xf32>
    %c0_i32_7 = arith.constant 0 : i32
    %c0_i32_8 = arith.constant 0 : i32
    %c0_i32_9 = arith.constant 0 : i32
    %14 = tpu.memref_slice %arg6[%c0_i32_2, %c0_i32_7, %c0_i32_8, %c0_i32_9] : memref<1x8x8x32xf32, #tpu.memory_space<vmem>> -> memref<1x8x8x32xf32, #tpu.memory_space<vmem>>
    %15 = tpu.memref_squeeze %14 : memref<1x8x8x32xf32, #tpu.memory_space<vmem>> -> memref<8x8x32xf32, #tpu.memory_space<vmem>>
    %16 = arith.index_cast %4 : i32 to index
    %c0_10 = arith.constant 0 : index
    %c0_11 = arith.constant 0 : index
    %17 = vector.load %15[%16, %c0_10, %c0_11] : memref<8x8x32xf32, #tpu.memory_space<vmem>>, vector<8x8x32xf32>
    tpu.vector_store %15[%16, %c0_10, %c0_11], %13 {strides = array<i32>} : memref<8x8x32xf32, #tpu.memory_space<vmem>>, vector<8x8x32xf32>,
    %c1_i32 = arith.constant 1 : i32
    return
  }
  func.func @transform_0(%arg0: i32, %arg1: memref<2xi32, #tpu.memory_space<smem>>, %arg2: memref<2xi32, #tpu.memory_space<smem>>, %arg3: memref<2xi32, #tpu.memory_space<smem>>) -> (i32, i32, i32) {
    %0 = arith.index_cast %arg0 : i32 to index
    %1 = memref.load %arg1[%0] : memref<2xi32, #tpu.memory_space<smem>>
    %2 = arith.index_cast %arg0 : i32 to index
    %3 = memref.load %arg2[%2] : memref<2xi32, #tpu.memory_space<smem>>
    %c0_i32 = arith.constant 0 : i32
    %c0_i32_0 = arith.constant 0 : i32
    return %1, %3, %c0_i32 : i32, i32, i32
  }
  func.func @transform_1(%arg0: i32, %arg1: memref<2xi32, #tpu.memory_space<smem>>, %arg2: memref<2xi32, #tpu.memory_space<smem>>, %arg3: memref<2xi32, #tpu.memory_space<smem>>) -> (i32, i32, i32) {
    %0 = arith.index_cast %arg0 : i32 to index
    %1 = memref.load %arg1[%0] : memref<2xi32, #tpu.memory_space<smem>>
    %2 = arith.index_cast %arg0 : i32 to index
    %3 = memref.load %arg3[%2] : memref<2xi32, #tpu.memory_space<smem>>
    %c0_i32 = arith.constant 0 : i32
    %c0_i32_0 = arith.constant 0 : i32
    return %1, %3, %c0_i32 : i32, i32, i32
  }
  func.func @transform_2(%arg0: i32, %arg1: memref<2xi32, #tpu.memory_space<smem>>, %arg2: memref<2xi32, #tpu.memory_space<smem>>, %arg3: memref<2xi32, #tpu.memory_space<smem>>) -> (i32, i32, i32, i32) {
    %c0_i32 = arith.constant 0 : i32
    %c0_i32_0 = arith.constant 0 : i32
    %c0_i32_1 = arith.constant 0 : i32
    %c0_i32_2 = arith.constant 0 : i32
    return %arg0, %c0_i32, %c0_i32_0, %c0_i32_1 : i32, i32, i32, i32
  }
}

</mosaic_0001>

<llo_original>
// kernel: tpu_custom_call.1
$region0: #{tpu_custom_call.1}
  #allocation0 [shape = 'u32[]', space=smem, size = 0x4, offset = 0x4, fixed_abs, tag = 'smem constant byte address 0x4 - core index']
  #allocation1 [shape = 'u32[144,128]{1,0:T(1,128)}', space=vmem, size = 0x12000, scoped, tag = 'internal scratch']
  #allocation2 [shape = 's32[1]{0}', space=sflag, size = 0x4, scoped, tag = 'scoped memory for tpu_custom_call.1']
  #allocation3 [shape = 'u8[512]{0}', space=smem, size = 0x200, scoped, tag = 'prefetched SMEM operand 0']
  #allocation4 [shape = 'u8[512]{0}', space=smem, size = 0x200, scoped, tag = 'prefetched SMEM operand 1']
  #allocation5 [shape = 'u8[512]{0}', space=smem, size = 0x200, scoped, tag = 'prefetched SMEM operand 2']
  %s0 = inlined_call_operand.hbm [shape: s32[2], index: 0, kind: input, shape index: {}]
  %s1 = inlined_call_operand.vmem [shape: s32[2], index: 1, kind: input, shape index: {}]
  %s2 = inlined_call_operand.vmem [shape: s32[2], index: 2, kind: input, shape index: {}]
  %s3 = inlined_call_operand.hbm [shape: f32[2,8,32], index: 3, kind: input, shape index: {}]
  %s4 = inlined_call_operand.hbm [shape: f32[2,8,32], index: 4, kind: input, shape index: {}]
  %s5 = inlined_call_operand.hbm [shape: f32[2,8,8,32], index: 5, kind: output, shape index: {}]
  %s6 = sld [smem:[#allocation0]]
  $region49: #{tpu_custom_call.1} parent=0
    _
  %s8 = ssub.s32 1, %s6
  %s9 = scalar_select 0, %s8, %s6
  %11 = dma.hbm_to_smem %s0, 16, [#allocation3], [#allocation2]
  %s12 = sshll.u32 %s1, 4
  %s13 = int_to_ptr.vmem [resolvable:$true] %s12
  %15 = dma.vmem_to_smem %s13, 16, [#allocation4], [#allocation2]
  %s16 = sshll.u32 %s2, 4
  %s17 = int_to_ptr.vmem [resolvable:$true] %s16
  %19 = dma.vmem_to_smem %s17, 16, [#allocation5], [#allocation2]
  %20 = dma.done [#allocation2], 48
  %21 = sfence
  $region1: #{tpu_custom_call.1} parent=0
    #allocation6 [shape = 'u8[8192]{0}', space=vmem, size = 0x2000, scoped, tag = 'input window, operand 3']
    #allocation7 [shape = 's32[2]{0}', space=sflag, size = 0x8, scoped, tag = 'scoped memory for tpu_custom_call.1']
    #allocation8 [shape = 's32[2]{0}', space=sflag, size = 0x8, scoped, tag = 'scoped memory for tpu_custom_call.1']
    #allocation9 [shape = 'u8[8192]{0}', space=vmem, size = 0x2000, scoped, tag = 'input window, operand 4']
    #allocation10 [shape = 's32[2]{0}', space=sflag, size = 0x8, scoped, tag = 'scoped memory for tpu_custom_call.1']
    #allocation11 [shape = 'u8[65536]{0}', space=vmem, size = 0x10000, scoped, tag = 'output window, operand 0']
    %22 = vsyncpa [#allocation7], 0
    %s23 = scalar_lea.sflag [#allocation7], 1
    %24 = vsyncpa %s23, 0
    %25 = vsyncpa [#allocation10], 0
    %s26 = scalar_lea.sflag [#allocation10], 1
    %27 = vsyncpa %s26, 0
    %28 = vsyncpa [#allocation8], 0
    %s29 = scalar_lea.sflag [#allocation8], 1
    %30 = vsyncpa %s29, 0
    loop: start=0, step=1, limit=4
    $region2: #{tpu_custom_call.1} parent=1 // loop_pre_header
      _
    $region3: #{tpu_custom_call.1} parent=1 // loop_header
      %s32 = sphi 0, %s36
      %p33 = scmp.ge.s32.totalorder %s32, 4
      %s48 = sphi 0, %s50
      %s51 = sphi 0, %s48
      %s52 = sphi 0, %s51
      %s68 = sphi 0, %s52
      %s80 = sphi 0, %s82
      %s83 = sphi 0, %s80
      %s84 = sphi 0, %s83
      %s100 = sphi 0, %s84
      %s106 = sphi 0, %s108
      %s109 = sphi 0, %s106
      %s110 = sphi 0, %s109
      %s126 = sphi 0, %s110
    $region4: #{tpu_custom_call.1} parent=1 // loop_header_branch
      %35 = sbr.rel (%p33) target = $region8
    $region5: #{tpu_custom_call.1} parent=1 // loop_body
      %s37 = ssub.s32 %s32, 1
      %s38 = ssub.s32 %s32, 2
      %s39 = sadd.s32 %s32, 1
      %s40 = sld [smem:[#allocation3 + %s32]]
      %s41 = sld [smem:[#allocation4 + %s32]]
      %s42 = sld [smem:[#allocation3 + %s39]]
      %s43 = sld [smem:[#allocation4 + %s39]]
      %s44 = ssub.s32 %s40, %s42
      %s45 = ssub.s32 %s41, %s43
      %s46 = sor.u32 %s44, %s45
      %p47 = scmp.eq.s32.totalorder %s46, 0
      %s49 = sadd.s32 %s48, 1
      %s50 = scalar_select %p47, %s48, %s49
      %p53 = pneg %p47
      %p54 = scmp.eq.s32.totalorder %s32, 1
      %p55 = por %p53, %p54
      %p56 = scmp.ne.s32.totalorder %s48, %s51
      %p57 = scmp.eq.s32.totalorder %s32, 0
      %p58 = por %p56, %p57
      %p59 = scmp.ne.s32.totalorder %s48, %s51
      %p60 = scmp.eq.s32.totalorder %s37, 1
      %p61 = por %p59, %p60
      %p62 = scmp.ne.s32.totalorder %s51, %s52
      %p63 = scmp.eq.s32.totalorder %s37, 0
      %p64 = por %p62, %p63
      %p65 = scmp.ne.s32.totalorder %s51, %s52
      %p66 = scmp.eq.s32.totalorder %s38, 1
      %p67 = por %p65, %p66
      %p69 = scmp.ne.s32.totalorder %s52, %s68
      %p70 = scmp.eq.s32.totalorder %s38, 0
      %p71 = por %p69, %p70
      %s72 = sld [smem:[#allocation3 + %s32]]
      %s73 = sld [smem:[#allocation5 + %s32]]
      %s74 = sld [smem:[#allocation3 + %s39]]
      %s75 = sld [smem:[#allocation5 + %s39]]
      %s76 = ssub.s32 %s72, %s74
      %s77 = ssub.s32 %s73, %s75
      %s78 = sor.u32 %s76, %s77
      %p79 = scmp.eq.s32.totalorder %s78, 0
      %s81 = sadd.s32 %s80, 1
      %s82 = scalar_select %p79, %s80, %s81
      %p85 = pneg %p79
      %p86 = scmp.eq.s32.totalorder %s32, 1
      %p87 = por %p85, %p86
      %p88 = scmp.ne.s32.totalorder %s80, %s83
      %p89 = scmp.eq.s32.totalorder %s32, 0
      %p90 = por %p88, %p89
      %p91 = scmp.ne.s32.totalorder %s80, %s83
      %p92 = scmp.eq.s32.totalorder %s37, 1
      %p93 = por %p91, %p92
      %p94 = scmp.ne.s32.totalorder %s83, %s84
      %p95 = scmp.eq.s32.totalorder %s37, 0
      %p96 = por %p94, %p95
      %p97 = scmp.ne.s32.totalorder %s83, %s84
      %p98 = scmp.eq.s32.totalorder %s38, 1
      %p99 = por %p97, %p98
      %p101 = scmp.ne.s32.totalorder %s84, %s100
      %p102 = scmp.eq.s32.totalorder %s38, 0
      %p103 = por %p101, %p102
      %s104 = ssub.s32 %s32, %s39
      %p105 = scmp.eq.s32.totalorder %s104, 0
      %s107 = sadd.s32 %s106, 1
      %s108 = scalar_select %p105, %s106, %s107
      %p111 = pneg %p105
      %p112 = scmp.eq.s32.totalorder %s32, 1
      %p113 = por %p111, %p112
      %p114 = scmp.ne.s32.totalorder %s106, %s109
      %p115 = scmp.eq.s32.totalorder %s32, 0
      %p116 = por %p114, %p115
      %p117 = scmp.ne.s32.totalorder %s106, %s109
      %p118 = scmp.eq.s32.totalorder %s37, 1
      %p119 = por %p117, %p118
      %p120 = scmp.ne.s32.totalorder %s109, %s110
      %p121 = scmp.eq.s32.totalorder %s37, 0
      %p122 = por %p120, %p121
      %p123 = scmp.ne.s32.totalorder %s109, %s110
      %p124 = scmp.eq.s32.totalorder %s38, 1
      %p125 = por %p123, %p124
      %p127 = scmp.ne.s32.totalorder %s110, %s126
      %p128 = scmp.eq.s32.totalorder %s38, 0
      %p129 = por %p127, %p128
      %p130 = scmp.le.s32.totalorder 1, %s32
      %p131 = scmp.lt.s32.totalorder %s32, 3
      %p132 = pnand %p130, %p131
      %p133 = pneg %p132
      // Predicated region
      $region9: #{tpu_custom_call.1} parent=5 // pred_check
        _
      $region10: #{tpu_custom_call.1} parent=5 // pred_check_branch
        %135 = sbr.rel (%p132) target = $region12
      $region11: #{tpu_custom_call.1} parent=5 // pred_region
        %s136 = ssub.s32 %s32, 1
      $region12: #{tpu_custom_call.1} parent=5 // pred_fallthru
        _
      %p137 = scmp.lt.s32.totalorder %s32, 2
      // Predicated region
      $region13: #{tpu_custom_call.1} parent=5 // pred_check
        %p138 = pneg %p137
      $region14: #{tpu_custom_call.1} parent=5 // pred_check_branch
        %140 = sbr.rel (%p138) target = $region16
      $region15: #{tpu_custom_call.1} parent=5 // pred_region
        // Predicated region
        $region17: #{tpu_custom_call.1} parent=15 // pred_check
          %p141 = pneg %p58
        $region18: #{tpu_custom_call.1} parent=15 // pred_check_branch
          %143 = sbr.rel (%p141) target = $region20
        $region19: #{tpu_custom_call.1} parent=15 // pred_region
          %s144 = sand.u32 %s48, 1
          %s145 = scalar_lea.sflag [#allocation7], %s144
          %s146 = sand.u32 %s48, 1
          %s147 = smul.addr %s146, 8
          %s148 = scalar_lea.vmem [#allocation6], %s147
          %s149 = sld [smem:[#allocation3 + %s32]]
          %s150 = sld [smem:[#allocation4 + %s32]]
          %s152 = ssub.s32 128, 128
          %153 = vsyncadd %s145, %s152
          %s154 = sadd.s32 %s150, %s149
          %s155 = smul.addr %s154, 128
          %s156 = scalar_lea.hbm %s3, %s155
          %s158 = sshll.u32 %s148, 4
          %s159 = int_to_ptr.vmem [resolvable:$true] %s158
          %161 = dma.hbm_to_vmem [thread:$0]  %s156, 128, %s159, %s145
        $region20: #{tpu_custom_call.1} parent=15 // pred_fallthru
          _
        // Predicated region
        $region21: #{tpu_custom_call.1} parent=15 // pred_check
          %p162 = pneg %p90
        $region22: #{tpu_custom_call.1} parent=15 // pred_check_branch
          %164 = sbr.rel (%p162) target = $region24
        $region23: #{tpu_custom_call.1} parent=15 // pred_region
          %s165 = sand.u32 %s80, 1
          %s166 = scalar_lea.sflag [#allocation10], %s165
          %s167 = sand.u32 %s80, 1
          %s168 = smul.addr %s167, 8
          %s169 = scalar_lea.vmem [#allocation9], %s168
          %s170 = sld [smem:[#allocation3 + %s32]]
          %s171 = sld [smem:[#allocation5 + %s32]]
          %s173 = ssub.s32 128, 128
          %174 = vsyncadd %s166, %s173
          %s175 = sadd.s32 %s171, %s170
          %s176 = smul.addr %s175, 128
          %s177 = scalar_lea.hbm %s4, %s176
          %s179 = sshll.u32 %s169, 4
          %s180 = int_to_ptr.vmem [resolvable:$true] %s179
          %182 = dma.hbm_to_vmem [thread:$0]  %s177, 128, %s180, %s166
        $region24: #{tpu_custom_call.1} parent=15 // pred_fallthru
          _
      $region16: #{tpu_custom_call.1} parent=5 // pred_fallthru
        _
      %p183 = scmp.le.s32.totalorder 1, %s32
      %p184 = scmp.lt.s32.totalorder %s32, 3
      %p185 = pnand %p183, %p184
      %p186 = pneg %p185
      // Predicated region
      $region25: #{tpu_custom_call.1} parent=5 // pred_check
        _
      $region26: #{tpu_custom_call.1} parent=5 // pred_check_branch
        %188 = sbr.rel (%p185) target = $region28
      $region27: #{tpu_custom_call.1} parent=5 // pred_region
        %s189 = ssub.s32 %s32, 1
        %s190 = sand.u32 %s51, 1
        %s191 = scalar_lea.sflag [#allocation7], %s190
        %s192 = sand.u32 %s51, 1
        %s193 = smul.addr %s192, 8
        %s194 = scalar_lea.vmem [#allocation6], %s193
        // Predicated region
        $region29: #{tpu_custom_call.1} parent=27 // pred_check
          %p195 = pneg %p64
        $region30: #{tpu_custom_call.1} parent=27 // pred_check_branch
          %197 = sbr.rel (%p195) target = $region32
        $region31: #{tpu_custom_call.1} parent=27 // pred_region
          %198 = dma.done %s191, 128
        $region32: #{tpu_custom_call.1} parent=27 // pred_fallthru
          _
        %s199 = sand.u32 %s83, 1
        %s200 = scalar_lea.sflag [#allocation10], %s199
        %s201 = sand.u32 %s83, 1
        %s202 = smul.addr %s201, 8
        %s203 = scalar_lea.vmem [#allocation9], %s202
        // Predicated region
        $region33: #{tpu_custom_call.1} parent=27 // pred_check
          %p204 = pneg %p96
        $region34: #{tpu_custom_call.1} parent=27 // pred_check_branch
          %206 = sbr.rel (%p204) target = $region36
        $region35: #{tpu_custom_call.1} parent=27 // pred_region
          %207 = dma.done %s200, 128
        $region36: #{tpu_custom_call.1} parent=27 // pred_fallthru
          _
        %s208 = sand.u32 %s51, 1
        %s209 = scalar_lea.sflag [#allocation7], %s208
        %s210 = sand.u32 %s51, 1
        %s211 = smul.addr %s210, 8
        %s212 = scalar_lea.vmem [#allocation6], %s211
        %p213 = pneg %p64
        %p214 = pneg %p61
        %s215 = sand.u32 %s83, 1
        %s216 = scalar_lea.sflag [#allocation10], %s215
        %s217 = sand.u32 %s83, 1
        %s218 = smul.addr %s217, 8
        %s219 = scalar_lea.vmem [#allocation9], %s218
        %p220 = pneg %p96
        %p221 = pneg %p93
        %p222 = pneg %p122
        %p223 = pneg %p119
        %s224 = sand.u32 %s109, 1
        %s225 = scalar_lea.sflag [#allocation8], %s224
        %s226 = sand.u32 %s109, 1
        %s227 = smul.addr %s226, 64
        %s228 = scalar_lea.vmem [#allocation11], %s227
        %s229 = sld [smem:[#allocation3 + %s37]]
        %s230 = sld [smem:[#allocation4 + %s37]]
        %s231 = sld [smem:[#allocation3 + %s37]]
        %s232 = sld [smem:[#allocation5 + %s37]]
        %v233 = vld [vmem:[%s203] sm:$0xff]
        %v234 = vld [vmem:[%s194] sm:$0xff]
        %v236 = vcombine.high %v234, %v234
        %v238 = vunpack.c.l.s4 1966171168
        %v239 = vunpack.c.0.s8 %v238
        %v240 = vlaneseq
        %v241 = vshrl.u32 %v240, 7
        %v242 = vsub.s32 %v239, %v241
        %v243 = vrot.slane %v234, %v242
        %v245 = vunpack.c.l.s4 1966171168
        %v246 = vunpack.c.0.s8 %v245
        %v247 = vlaneseq
        %v248 = vshrl.u32 %v247, 7
        %v249 = vsub.s32 %v246, %v248
        %v250 = vrot.slane %v236, %v249
        %v251 = vcombine.high %v243, %v243
        %v252 = vcombine.high %v250, %v250
        %v254 = vunpack.c.l.s4 1966171168
        %v255 = vunpack.c.0.s8 %v254
        %v256 = vlaneseq
        %v257 = vshrl.u32 %v256, 7
        %v258 = vsub.s32 %v255, %v257
        %v259 = vrot.slane %v243, %v258
        %v261 = vunpack.c.l.s4 1966171168
        %v262 = vunpack.c.0.s8 %v261
        %v263 = vlaneseq
        %v264 = vshrl.u32 %v263, 7
        %v265 = vsub.s32 %v262, %v264
        %v266 = vrot.slane %v250, %v265
        %v268 = vunpack.c.l.s4 1966171168
        %v269 = vunpack.c.0.s8 %v268
        %v270 = vlaneseq
        %v271 = vshrl.u32 %v270, 7
        %v272 = vsub.s32 %v269, %v271
        %v273 = vrot.slane %v251, %v272
        %v275 = vunpack.c.l.s4 1966171168
        %v276 = vunpack.c.0.s8 %v275
        %v277 = vlaneseq
        %v278 = vshrl.u32 %v277, 7
        %v279 = vsub.s32 %v276, %v278
        %v280 = vrot.slane %v252, %v279
        %v281 = vcombine.high %v259, %v259
        %v282 = vcombine.high %v266, %v266
        %v283 = vcombine.high %v273, %v273
        %v284 = vcombine.high %v280, %v280
        %v285 = vlaneseq
        %v286 = vshrl.u32 %v285, 7
        %v287 = vsub.s32 0, %v286
        %v288 = vrot.slane %v259, %v287
        %v289 = vlaneseq
        %v290 = vshrl.u32 %v289, 7
        %v291 = vsub.s32 0, %v290
        %v292 = vrot.slane %v273, %v291
        %v293 = vlaneseq
        %v294 = vshrl.u32 %v293, 7
        %v295 = vsub.s32 0, %v294
        %v296 = vrot.slane %v281, %v295
        %v297 = vlaneseq
        %v298 = vshrl.u32 %v297, 7
        %v299 = vsub.s32 0, %v298
        %v300 = vrot.slane %v283, %v299
        %v301 = vlaneseq
        %v302 = vshrl.u32 %v301, 7
        %v303 = vsub.s32 0, %v302
        %v304 = vrot.slane %v266, %v303
        %v305 = vlaneseq
        %v306 = vshrl.u32 %v305, 7
        %v307 = vsub.s32 0, %v306
        %v308 = vrot.slane %v280, %v307
        %v309 = vlaneseq
        %v310 = vshrl.u32 %v309, 7
        %v311 = vsub.s32 0, %v310
        %v312 = vrot.slane %v282, %v311
        %v313 = vlaneseq
        %v314 = vshrl.u32 %v313, 7
        %v315 = vsub.s32 0, %v314
        %v316 = vrot.slane %v284, %v315
        %v325 = vadd.f32 %v288, %v233
        %v326 = vadd.f32 %v292, %v233
        %v327 = vadd.f32 %v296, %v233
        %v328 = vadd.f32 %v300, %v233
        %v329 = vadd.f32 %v304, %v233
        %v330 = vadd.f32 %v308, %v233
        %v331 = vadd.f32 %v312, %v233
        %v332 = vadd.f32 %v316, %v233
        %v333 = vtanh.pop %v325
        %v334 = vtanh.pop %v326
        %v335 = vtanh.pop %v327
        %v336 = vtanh.pop %v328
        %v337 = vtanh.pop %v329
        %v338 = vtanh.pop %v330
        %v339 = vtanh.pop %v331
        %v340 = vtanh.pop %v332
        %s341 = smul.u32 0, 8
        %s342 = scalar_lea.vmem %s228, %s341 [#allocation11]
        %vm343 = vcmask 261120
        %344 = vst.msk [vmem:[%s342] sm:$0xff] %vm343, %v333
        %345 = vst.msk [vmem:[%s342 + $0x8] sm:$0xff] %vm343, %v334
        %346 = vst.msk [vmem:[%s342 + $0x10] sm:$0xff] %vm343, %v335
        %347 = vst.msk [vmem:[%s342 + $0x18] sm:$0xff] %vm343, %v336
        %348 = vst.msk [vmem:[%s342 + $0x20] sm:$0xff] %vm343, %v337
        %349 = vst.msk [vmem:[%s342 + $0x28] sm:$0xff] %vm343, %v338
        %350 = vst.msk [vmem:[%s342 + $0x30] sm:$0xff] %vm343, %v339
        %351 = vst.msk [vmem:[%s342 + $0x38] sm:$0xff] %vm343, %v340
        %s352 = sand.u32 %s109, 1
        %s353 = scalar_lea.sflag [#allocation8], %s352
        %s354 = sand.u32 %s109, 1
        %s355 = smul.addr %s354, 64
        %s356 = scalar_lea.vmem [#allocation11], %s355
        // Predicated region
        $region37: #{tpu_custom_call.1} parent=27 // pred_check
          %p357 = pneg %p119
        $region38: #{tpu_custom_call.1} parent=27 // pred_check_branch
          %359 = sbr.rel (%p357) target = $region40
        $region39: #{tpu_custom_call.1} parent=27 // pred_region
          %s361 = ssub.s32 1024, 1024
          %362 = vsyncadd %s353, %s361
          %s363 = smul.addr %s37, 8
          %s364 = smul.addr %s363, 128
          %s365 = scalar_lea.hbm %s5, %s364
          %s366 = sshll.u32 %s356, 4
          %s367 = int_to_ptr.vmem [resolvable:$true] %s366
          %372 = dma.vmem_to_hbm [thread:$0]  %s367, 1024, %s365, %s353, 128, 128, 8
        $region40: #{tpu_custom_call.1} parent=27 // pred_fallthru
          _
      $region28: #{tpu_custom_call.1} parent=5 // pred_fallthru
        _
      %p373 = scmp.le.s32.totalorder 2, %s32
      // Predicated region
      $region41: #{tpu_custom_call.1} parent=5 // pred_check
        %p374 = pneg %p373
      $region42: #{tpu_custom_call.1} parent=5 // pred_check_branch
        %376 = sbr.rel (%p374) target = $region44
      $region43: #{tpu_custom_call.1} parent=5 // pred_region
        %s377 = ssub.s32 %s32, 2
        // Predicated region
        $region45: #{tpu_custom_call.1} parent=43 // pred_check
          %p378 = pneg %p125
        $region46: #{tpu_custom_call.1} parent=43 // pred_check_branch
          %380 = sbr.rel (%p378) target = $region48
        $region47: #{tpu_custom_call.1} parent=43 // pred_region
          %s381 = sand.u32 %s110, 1
          %s382 = scalar_lea.sflag [#allocation8], %s381
          %s383 = sand.u32 %s110, 1
          %s384 = smul.addr %s383, 64
          %s385 = scalar_lea.vmem [#allocation11], %s384
          %386 = dma.done %s382, 1024
        $region48: #{tpu_custom_call.1} parent=43 // pred_fallthru
          _
      $region44: #{tpu_custom_call.1} parent=5 // pred_fallthru
        _
    $region6: #{tpu_custom_call.1} parent=1 // loop_footer
      %s36 = sadd.s32 1, %s32
    $region7: #{tpu_custom_call.1} parent=1 // loop_footer_branch
      %31 = sbr.rel target = $region3
    $region8: #{tpu_custom_call.1} parent=1 // loop_exit
      _
    %387 = vsyncpa [#allocation7], 1
    %s388 = scalar_lea.sflag [#allocation7], 1
    %389 = vsyncpa %s388, 1
    %390 = vsyncpa [#allocation10], 1
    %s391 = scalar_lea.sflag [#allocation10], 1
    %392 = vsyncpa %s391, 1
    %393 = vsyncpa [#allocation8], 1
    %s394 = scalar_lea.sflag [#allocation8], 1
    %395 = vsyncpa %s394, 1

</llo_original>
